<compile_context>
chip_gen: v5e
topology: v5e:2x2
jax: 0.10.0
libtpu: 0.0.40
codegen_flags: <defaults>
</compile_context>

<pallas_src>
import jax
import jax.numpy as jnp
from jax.experimental import pallas as pl
from jax.experimental.pallas import tpu as pltpu


def _round_up(n, m):
    return ((n + m - 1) // m) * m


def _sampler_kernel(xT_ref, w_ref, b_ref, epsT_ref, outT_ref):
    """xT:(F,TB)  w:(2F,F)  b:(2F,1)  epsT:(F,TB)  outT:(2F,TB)."""
    f = xT_ref.shape[0]
    # Single fused MXU matmul, f32 accumulation; bias broadcasts along lanes.
    h = jnp.dot(w_ref[...], xT_ref[...],
                preferred_element_type=jnp.float32) + b_ref[...]   # (2F, TB)
    mu = h[0:f, :]                       # sublane slice (multiple-of-8 boundary)
    logvar = h[f:2 * f, :]
    std = jnp.exp(0.5 * logvar)          # the only EUP transcendental
    z = epsT_ref[...] * std + mu
    kld = 1.0 + logvar - mu * mu - std * std     # std*std == exp(logvar) to ~1 ulp
    # Full-lane-width unmasked stores; split is on the sublane axis.
    outT_ref[0:f, :] = z.astype(outT_ref.dtype)
    outT_ref[f:2 * f, :] = kld.astype(outT_ref.dtype)


def _choose_tile(batch, block_b):
    if block_b % 128 != 0:
        raise ValueError(f"block_b must be a multiple of 128, got {block_b}")
    if batch <= 128:
        return batch                       # single tile; exempt (== full lane dim)
    # Split into >= 2 grid steps so v7x megacore shards the batch axis,
    # capped at block_b (keeps double-buffered VMEM well under 32 MiB).
    half = _round_up(pl.cdiv(batch, 2), 128)
    return max(128, min(block_b, half))


def part_feat_sampler(x, w_fused, b_fused, *, eps=None, key=None, block_b=4096):
    """x: (B, F).  w_fused: (2F, F) torch (out,in) layout.  b_fused: (2F, 1).

    Returns (B, 2F) = [z | kld].  If `eps` is None it is drawn ~N(0,1) from
    `key` (default PRNGKey(0)) in the wrapper.
    """
    B, F = x.shape
    assert w_fused.shape == (2 * F, F), w_fused.shape
    assert b_fused.shape == (2 * F, 1), b_fused.shape

    if eps is None:
        if key is None:
            key = jax.random.PRNGKey(0)
        eps = jax.random.normal(key, (B, F), x.dtype)

    # Lane-dense presentation: batch on the 128-lane (last) axis.
    xT = x.T                                   # (F, B)
    epsT = eps.T                               # (F, B)

    TB = _choose_tile(B, block_b)
    grid = (pl.cdiv(B, TB),)

    grid_spec = pltpu.PrefetchScalarGridSpec(
        num_scalar_prefetch=0,
        grid=grid,
        in_specs=[
            pl.BlockSpec((F, TB), lambda i: (0, i)),        # x^T tile  (streamed)
            pl.BlockSpec((2 * F, F), lambda i: (0, 0)),     # fused W   (VMEM-resident)
            pl.BlockSpec((2 * F, 1), lambda i: (0, 0)),     # fused b   (VMEM-resident)
            pl.BlockSpec((F, TB), lambda i: (0, i)),        # eps^T tile
        ],
        out_specs=pl.BlockSpec((2 * F, TB), lambda i: (0, i)),
    )

    outT = pl.pallas_call(
        _sampler_kernel,
        out_shape=jax.ShapeDtypeStruct((2 * F, B), x.dtype),
        grid_spec=grid_spec,
        compiler_params=pltpu.CompilerParams(dimension_semantics=("parallel",)),
    )(xT, w_fused, b_fused, epsT)

    return outT.T                              # (B, 2F) = [z | kld]


def fuse_params(w_mu, b_mu, w_var, b_var):
    """Hoisted one-time fusion of the two Linear layers (torch (out,in) layout)."""
    f_out = w_mu.shape[0]
    w_fused = jnp.concatenate([w_mu, w_var], axis=0)                 # (2F, F)
    b_fused = jnp.concatenate([b_mu, b_var]).reshape(2 * f_out, 1)   # (2F, 1)
    return w_fused, b_fused


def init_params(key, feature_size):
    """Deterministic nn.Linear-style init: U(-1/sqrt(F), 1/sqrt(F)), (out,in) layout."""
    k1, k2, k3, k4 = jax.random.split(key, 4)
    bound = 1.0 / (feature_size ** 0.5)
    w_mu = jax.random.uniform(k1, (feature_size, feature_size), jnp.float32, -bound, bound)
    b_mu = jax.random.uniform(k2, (feature_size,), jnp.float32, -bound, bound)
    w_var = jax.random.uniform(k3, (feature_size, feature_size), jnp.float32, -bound, bound)
    b_var = jax.random.uniform(k4, (feature_size,), jnp.float32, -bound, bound)
    return w_mu, b_mu, w_var, b_var


def _reference(x, eps, w_mu, b_mu, w_var, b_var):
    hi = jax.lax.Precision.HIGHEST
    mu = jnp.dot(x, w_mu.T, precision=hi) + b_mu
    logvar = jnp.dot(x, w_var.T, precision=hi) + b_var
    std = jnp.exp(0.5 * logvar)
    z = eps * std + mu
    kld = 1.0 + logvar - mu ** 2 - jnp.exp(logvar)
    return jnp.concatenate([z, kld], axis=1), mu, logvar, kld


if __name__ == "__main__":
    feature_size = 32
    batch = 8

    key = jax.random.PRNGKey(0)
    k_x, k_eps, k_params, k_x2, k_eps2 = jax.random.split(key, 5)

    x = jax.random.normal(k_x, (batch, feature_size), jnp.float32)
    eps = jax.random.normal(k_eps, (batch, feature_size), jnp.float32)
    w_mu, b_mu, w_var, b_var = init_params(k_params, feature_size)
    w_fused, b_fused = fuse_params(w_mu, b_mu, w_var, b_var)   # hoisted, done once

    ref, mu_ref, logvar_ref, kld_ref = _reference(x, eps, w_mu, b_mu, w_var, b_var)

    # 1) Deterministic-eps path: exact check against the reference.
    out_det = part_feat_sampler(x, w_fused, b_fused, eps=eps)
    jax.block_until_ready(out_det)
    assert out_det.shape == (batch, 2 * feature_size), out_det.shape
    max_err = float(jnp.abs(out_det - ref).max())
    assert jnp.allclose(out_det, ref, atol=1e-4, rtol=1e-4), max_err

    # 2) Stochastic path: eps drawn in the wrapper from a key.
    out_rng = part_feat_sampler(x, w_fused, b_fused, key=jax.random.PRNGKey(7))
    jax.block_until_ready(out_rng)
    assert out_rng.shape == (batch, 2 * feature_size), out_rng.shape
    # kld half does not depend on eps -> must still match the reference.
    kld_err = float(jnp.abs(out_rng[:, feature_size:] - kld_ref).max())
    assert jnp.allclose(out_rng[:, feature_size:], kld_ref, atol=1e-4, rtol=1e-4), kld_err
    # z half: recovered eps = (z - mu)/std should look like N(0, 1).
    std_ref = jnp.exp(0.5 * logvar_ref)
    eps_rec = (out_rng[:, :feature_size] - mu_ref) / std_ref
    assert bool(jnp.all(jnp.isfinite(eps_rec)))
    assert abs(float(eps_rec.mean())) < 0.5, float(eps_rec.mean())
    assert 0.5 < float(eps_rec.std()) < 1.5, float(eps_rec.std())

    # 3) Multi-tile path (exercises streaming + >=2 grid steps for megacore).
    batch2 = 512
    x2 = jax.random.normal(k_x2, (batch2, feature_size), jnp.float32)
    eps2 = jax.random.normal(k_eps2, (batch2, feature_size), jnp.float32)
    ref2, _, _, _ = _reference(x2, eps2, w_mu, b_mu, w_var, b_var)
    out_tiled = part_feat_sampler(x2, w_fused, b_fused, eps=eps2, block_b=256)
    jax.block_until_ready(out_tiled)
    assert out_tiled.shape == (batch2, 2 * feature_size), out_tiled.shape
    max_err2 = float(jnp.abs(out_tiled - ref2).max())
    assert jnp.allclose(out_tiled, ref2, atol=1e-4, rtol=1e-4), max_err2

    print("KERNEL_OK")
</pallas_src>

<mosaic_0001>
module attributes {stable_mosaic.version = 11 : i64} {
  func.func @_sampler_kernel(%arg0: i32, %arg1: memref<32x8xf32, #tpu.memory_space<vmem>>, %arg2: memref<64x32xf32, #tpu.memory_space<vmem>>, %arg3: memref<64x1xf32, #tpu.memory_space<vmem>>, %arg4: memref<32x8xf32, #tpu.memory_space<vmem>>, %arg5: memref<64x8xf32, #tpu.memory_space<vmem>>) attributes {dimension_semantics = [#tpu.dimension_semantics<parallel>], iteration_bounds = array<i64: 1>, scalar_prefetch = 0 : i64, scratch_operands = 0 : i64, tpu.core_type = #tpu.core_type<tc>, window_params = [{transform_indices = @transform_0, window_bounds = array<i64: 32, 8>}, {pipeline_mode = #tpu.pipeline_mode<synchronous>, transform_indices = @transform_1, window_bounds = array<i64: 64, 32>}, {pipeline_mode = #tpu.pipeline_mode<synchronous>, transform_indices = @transform_2, window_bounds = array<i64: 64, 1>}, {transform_indices = @transform_3, window_bounds = array<i64: 32, 8>}, {transform_indices = @transform_4, window_bounds = array<i64: 64, 8>}]} {
    %c0 = arith.constant 0 : index
    %c0_0 = arith.constant 0 : index
    %0 = vector.load %arg2[%c0, %c0_0] : memref<64x32xf32, #tpu.memory_space<vmem>>, vector<64x32xf32>
    %c0_1 = arith.constant 0 : index
    %c0_2 = arith.constant 0 : index
    %1 = vector.load %arg1[%c0_1, %c0_2] : memref<32x8xf32, #tpu.memory_space<vmem>>, vector<32x8xf32>
    %cst = arith.constant dense<0.000000e+00> : vector<64x8xf32>
    %2 = tpu.matmul %0, %1, %cst {dimension_numbers = #tpu.dot_dimension_numbers<[1], [0], [0], [1], [0, 0, 1, 1], [], []>} : vector<64x32xf32>, vector<32x8xf32>, vector<64x8xf32> -> vector<64x8xf32>
    %c0_3 = arith.constant 0 : index
    %c0_4 = arith.constant 0 : index
    %3 = vector.load %arg3[%c0_3, %c0_4] : memref<64x1xf32, #tpu.memory_space<vmem>>, vector<64x1xf32>
    %4 = vector.broadcast %3 : vector<64x1xf32> to vector<64x8xf32>
    %5 = arith.addf %2, %4 : vector<64x8xf32>
    %6 = vector.extract_strided_slice %5 {offsets = [0, 0], sizes = [32, 8], strides = [1, 1]} : vector<64x8xf32> to vector<32x8xf32>
    %7 = vector.extract_strided_slice %5 {offsets = [32, 0], sizes = [32, 8], strides = [1, 1]} : vector<64x8xf32> to vector<32x8xf32>
    %cst_5 = arith.constant 5.000000e-01 : f32
    %8 = vector.broadcast %cst_5 : f32 to vector<32x8xf32>
    %9 = arith.mulf %8, %7 : vector<32x8xf32>
    %10 = math.exp %9 : vector<32x8xf32>
    %c0_6 = arith.constant 0 : index
    %c0_7 = arith.constant 0 : index
    %11 = vector.load %arg4[%c0_6, %c0_7] : memref<32x8xf32, #tpu.memory_space<vmem>>, vector<32x8xf32>
    %12 = arith.mulf %11, %10 : vector<32x8xf32>
    %13 = arith.addf %12, %6 : vector<32x8xf32>
    %cst_8 = arith.constant 1.000000e+00 : f32
    %14 = vector.broadcast %cst_8 : f32 to vector<32x8xf32>
    %15 = arith.addf %14, %7 : vector<32x8xf32>
    %16 = arith.mulf %6, %6 : vector<32x8xf32>
    %17 = arith.subf %15, %16 : vector<32x8xf32>
    %18 = arith.mulf %10, %10 : vector<32x8xf32>
    %19 = arith.subf %17, %18 : vector<32x8xf32>
    %c0_9 = arith.constant 0 : index
    %c0_10 = arith.constant 0 : index
    %20 = vector.load %arg5[%c0_9, %c0_10] : memref<64x8xf32, #tpu.memory_space<vmem>>, vector<32x8xf32>
    tpu.vector_store %arg5[%c0_9, %c0_10], %13 {strides = array<i32>} : memref<64x8xf32, #tpu.memory_space<vmem>>, vector<32x8xf32>,
    %c32 = arith.constant 32 : index
    %c0_11 = arith.constant 0 : index
    %21 = vector.load %arg5[%c32, %c0_11] : memref<64x8xf32, #tpu.memory_space<vmem>>, vector<32x8xf32>
    tpu.vector_store %arg5[%c32, %c0_11], %19 {strides = array<i32>} : memref<64x8xf32, #tpu.memory_space<vmem>>, vector<32x8xf32>,
    return
  }
  func.func @transform_0(%arg0: i32) -> (i32, i32) {
    %c0_i32 = arith.constant 0 : i32
    %c0_i32_0 = arith.constant 0 : i32
    return %c0_i32, %arg0 : i32, i32
  }
  func.func @transform_1(%arg0: i32) -> (i32, i32) {
    %c0_i32 = arith.constant 0 : i32
    %c0_i32_0 = arith.constant 0 : i32
    %c0_i32_1 = arith.constant 0 : i32
    return %c0_i32, %c0_i32_0 : i32, i32
  }
  func.func @transform_2(%arg0: i32) -> (i32, i32) {
    %c0_i32 = arith.constant 0 : i32
    %c0_i32_0 = arith.constant 0 : i32
    %c0_i32_1 = arith.constant 0 : i32
    return %c0_i32, %c0_i32_0 : i32, i32
  }
  func.func @transform_3(%arg0: i32) -> (i32, i32) {
    %c0_i32 = arith.constant 0 : i32
    %c0_i32_0 = arith.constant 0 : i32
    return %c0_i32, %arg0 : i32, i32
  }
  func.func @transform_4(%arg0: i32) -> (i32, i32) {
    %c0_i32 = arith.constant 0 : i32
    %c0_i32_0 = arith.constant 0 : i32
    return %c0_i32, %arg0 : i32, i32
  }
}

</mosaic_0001>

<llo_original>
// kernel: tpu_custom_call.1
$region0: #{tpu_custom_call.1}
  #allocation0 [shape = 'u32[]', space=smem, size = 0x4, offset = 0x4, fixed_abs, tag = 'smem constant byte address 0x4 - core index']
  #allocation1 [shape = 'u32[72,128]{1,0:T(1,128)}', space=vmem, size = 0x9000, scoped, tag = 'internal scratch']
  %s0 = inlined_call_operand.vmem [shape: f32[32,8], index: 0, kind: input, shape index: {}]
  %s1 = inlined_call_operand.vmem [shape: f32[64,32], index: 1, kind: input, shape index: {}]
  %s2 = inlined_call_operand.vmem [shape: f32[64,1], index: 2, kind: input, shape index: {}]
  %s3 = inlined_call_operand.vmem [shape: f32[32,8], index: 3, kind: input, shape index: {}]
  %s4 = inlined_call_operand.vmem [shape: f32[64,8], index: 4, kind: output, shape index: {}]
  %s5 = sld [smem:[#allocation0]]
  $region26: #{tpu_custom_call.1} parent=0
    _
  %s7 = ssub.s32 1, %s5
  %s8 = scalar_select 0, %s7, %s5
  // Predicated region
  $region2: #{tpu_custom_call.1} parent=0 // pred_check
    _
  $region3: #{tpu_custom_call.1} parent=0 // pred_check_branch
    %10 = sbr.rel (0) target = $region5
  $region4: #{tpu_custom_call.1} parent=0 // pred_region
    _
  $region5: #{tpu_custom_call.1} parent=0 // pred_fallthru
    _
  // Predicated region
  $region6: #{tpu_custom_call.1} parent=0 // pred_check
    _
  $region7: #{tpu_custom_call.1} parent=0 // pred_check_branch
    %12 = sbr.rel (0) target = $region9
  $region8: #{tpu_custom_call.1} parent=0 // pred_region
    _
  $region9: #{tpu_custom_call.1} parent=0 // pred_fallthru
    _
  // Predicated region
  $region10: #{tpu_custom_call.1} parent=0 // pred_check
    _
  $region11: #{tpu_custom_call.1} parent=0 // pred_check_branch
    %14 = sbr.rel (0) target = $region13
  $region12: #{tpu_custom_call.1} parent=0 // pred_region
    _
  $region13: #{tpu_custom_call.1} parent=0 // pred_fallthru
    _
  // Predicated region
  $region14: #{tpu_custom_call.1} parent=0 // pred_check
    _
  $region15: #{tpu_custom_call.1} parent=0 // pred_check_branch
    %16 = sbr.rel (0) target = $region17
  $region16: #{tpu_custom_call.1} parent=0 // pred_region
    _
  $region17: #{tpu_custom_call.1} parent=0 // pred_fallthru
    _
  %v17 = vld [vmem:[%s1] sm:$0xff]
  %v18 = vld [vmem:[%s1 + $0x8] sm:$0xff]
  %v19 = vld [vmem:[%s1 + $0x10] sm:$0xff]
  %v20 = vld [vmem:[%s1 + $0x18] sm:$0xff]
  %v21 = vld [vmem:[%s1 + $0x20] sm:$0xff]
  %v22 = vld [vmem:[%s1 + $0x28] sm:$0xff]
  %v23 = vld [vmem:[%s1 + $0x30] sm:$0xff]
  %v24 = vld [vmem:[%s1 + $0x38] sm:$0xff]
  %v25 = vld [vmem:[%s0] sm:$0xff]
  %v26 = vld [vmem:[%s0 + $0x8] sm:$0xff]
  %v27 = vld [vmem:[%s0 + $0x10] sm:$0xff]
  %v28 = vld [vmem:[%s0 + $0x18] sm:$0xff]
  %v29 = vld [vmem:[%s2] sm:$0xff]
  %v30 = vld [vmem:[%s2 + $0x8] sm:$0xff]
  %v31 = vld [vmem:[%s2 + $0x10] sm:$0xff]
  %v32 = vld [vmem:[%s2 + $0x18] sm:$0xff]
  %v33 = vld [vmem:[%s2 + $0x20] sm:$0xff]
  %v34 = vld [vmem:[%s2 + $0x28] sm:$0xff]
  %v35 = vld [vmem:[%s2 + $0x30] sm:$0xff]
  %v36 = vld [vmem:[%s2 + $0x38] sm:$0xff]
  %38 = vset.pattern.permute.xlu0 0
  %39 = vperm.xlu0 %38, %v29
  %v40 = vpop.permute.xlu0 %39
  %43 = vset.pattern.permute.xlu0 0
  %44 = vperm.xlu0 %43, %v30
  %v45 = vpop.permute.xlu0 %44
  %48 = vset.pattern.permute.xlu0 0
  %49 = vperm.xlu0 %48, %v31
  %v50 = vpop.permute.xlu0 %49
  %53 = vset.pattern.permute.xlu0 0
  %54 = vperm.xlu0 %53, %v32
  %v55 = vpop.permute.xlu0 %54
  %58 = vset.pattern.permute.xlu0 0
  %59 = vperm.xlu0 %58, %v33
  %v60 = vpop.permute.xlu0 %59
  %63 = vset.pattern.permute.xlu0 0
  %64 = vperm.xlu0 %63, %v34
  %v65 = vpop.permute.xlu0 %64
  %68 = vset.pattern.permute.xlu0 0
  %69 = vperm.xlu0 %68, %v35
  %v70 = vpop.permute.xlu0 %69
  %73 = vset.pattern.permute.xlu0 0
  %74 = vperm.xlu0 %73, %v36
  %v75 = vpop.permute.xlu0 %74
  %vm77 = vcmask 261120
  %v79 = vsel %vm77, %v17, 0
  %v82 = vsel %vm77, %v18, 0
  %v85 = vsel %vm77, %v19, 0
  %v88 = vsel %vm77, %v20, 0
  %v91 = vsel %vm77, %v21, 0
  %v94 = vsel %vm77, %v22, 0
  %v97 = vsel %vm77, %v23, 0
  %v100 = vsel %vm77, %v24, 0
  %102 = vmatpush.msra.mxu0 0.0
  %103 = vmatpush.msra.mxu0 0.0
  %104 = vmatpush.msra.mxu0 0.0
  %105 = vmatpush.msra.mxu0 0.0
  %106 = vmatpush.msra.mxu0 0.0
  %107 = vmatpush.msra.mxu0 0.0
  %108 = vmatpush.msra.mxu0 0.0
  %109 = vmatpush.msra.mxu0 0.0
  %110 = vmatpush.msra.mxu0 0.0
  %111 = vmatpush.msra.mxu0 0.0
  %112 = vmatpush.msra.mxu0 0.0
  %113 = vmatpush.msra.mxu0 0.0
  %114 = vmatpush.msra.mxu0 %v28
  %115 = vmatpush.msra.mxu0 %v27
  %116 = vmatpush.msra.mxu0 %v26
  %117 = vmatpush.msra.mxu0 %v25
  %118 = vmatmul.f32.gmra.mxu0 %v79
  %v119 = vpop.f32.mrf.mxu0
  %v120 = vadd.f32 %v40, %v119
  %121 = vmatmul.f32.gmra.mxu0 %v82
  %v122 = vpop.f32.mrf.mxu0
  %v123 = vadd.f32 %v45, %v122
  %124 = vmatmul.f32.gmra.mxu0 %v85
  %v125 = vpop.f32.mrf.mxu0
  %v126 = vadd.f32 %v50, %v125
  %127 = vmatmul.f32.gmra.mxu0 %v88
  %v128 = vpop.f32.mrf.mxu0
  %v129 = vadd.f32 %v55, %v128
  %130 = vmatmul.f32.gmra.mxu0 %v91
  %v131 = vpop.f32.mrf.mxu0
  %v132 = vadd.f32 %v60, %v131
  %133 = vmatmul.f32.gmra.mxu0 %v94
  %v134 = vpop.f32.mrf.mxu0
  %v135 = vadd.f32 %v65, %v134
  %136 = vmatmul.f32.gmra.mxu0 %v97
  %v137 = vpop.f32.mrf.mxu0
  %v138 = vadd.f32 %v70, %v137
  %139 = vmatmul.f32.gmra.mxu0 %v100
  %v140 = vpop.f32.mrf.mxu0
  %v141 = vadd.f32 %v75, %v140
  %142 = vdwg.mxu0
  %v143 = vmul.f32 %v132, 0.5
  %v144 = vmul.f32 %v135, 0.5
  %v145 = vmul.f32 %v138, 0.5
  %v146 = vmul.f32 %v141, 0.5
  %v147 = vmul.f32 %v143, 1.442695
  %v148 = vpow.pop %v147
  %v149 = vmul.f32 %v144, 1.442695
  %v150 = vpow.pop %v149
  %v151 = vmul.f32 %v145, 1.442695
  %v152 = vpow.pop %v151
  %v153 = vmul.f32 %v146, 1.442695
  %v154 = vpow.pop %v153
  %v155 = vld [vmem:[%s3] sm:$0xff]
  %v156 = vld [vmem:[%s3 + $0x8] sm:$0xff]
  %v157 = vld [vmem:[%s3 + $0x10] sm:$0xff]
  %v158 = vld [vmem:[%s3 + $0x18] sm:$0xff]
  %v159 = vmul.f32 %v155, %v148
  %v160 = vmul.f32 %v156, %v150
  %v161 = vmul.f32 %v157, %v152
  %v162 = vmul.f32 %v158, %v154
  %v163 = vadd.f32 %v159, %v120
  %v164 = vadd.f32 %v160, %v123
  %v165 = vadd.f32 %v161, %v126
  %v166 = vadd.f32 %v162, %v129
  %v167 = vadd.f32 %v132, 1.0
  %v168 = vadd.f32 %v135, 1.0
  %v169 = vadd.f32 %v138, 1.0
  %v170 = vadd.f32 %v141, 1.0
  %v171 = vmul.f32 %v120, %v120
  %v172 = vmul.f32 %v123, %v123
  %v173 = vmul.f32 %v126, %v126
  %v174 = vmul.f32 %v129, %v129
  %v175 = vsub.f32 %v167, %v171
  %v176 = vsub.f32 %v168, %v172
  %v177 = vsub.f32 %v169, %v173
  %v178 = vsub.f32 %v170, %v174
  %v179 = vmul.f32 %v148, %v148
  %v180 = vmul.f32 %v150, %v150
  %v181 = vmul.f32 %v152, %v152
  %v182 = vmul.f32 %v154, %v154
  %v183 = vsub.f32 %v175, %v179
  %v184 = vsub.f32 %v176, %v180
  %v185 = vsub.f32 %v177, %v181
  %v186 = vsub.f32 %v178, %v182
  %vm187 = vcmask 64512
  %188 = vst.msk [vmem:[%s4] sm:$0xff] %vm187, %v163
  %189 = vst.msk [vmem:[%s4 + $0x8] sm:$0xff] %vm187, %v164
  %190 = vst.msk [vmem:[%s4 + $0x10] sm:$0xff] %vm187, %v165
  %191 = vst.msk [vmem:[%s4 + $0x18] sm:$0xff] %vm187, %v166
  %192 = vst.msk [vmem:[%s4 + $0x20] sm:$0xff] %vm187, %v183
  %193 = vst.msk [vmem:[%s4 + $0x28] sm:$0xff] %vm187, %v184
  %194 = vst.msk [vmem:[%s4 + $0x30] sm:$0xff] %vm187, %v185
  %195 = vst.msk [vmem:[%s4 + $0x38] sm:$0xff] %vm187, %v186
  // Predicated region
  $region18: #{tpu_custom_call.1} parent=0 // pred_check
    _
  $region19: #{tpu_custom_call.1} parent=0 // pred_check_branch
    %197 = sbr.rel (0) target = $region21
  $region20: #{tpu_custom_call.1} parent=0 // pred_region
    _
  $region21: #{tpu_custom_call.1} parent=0 // pred_fallthru
    _
  // Predicated region
  $region22: #{tpu_custom_call.1} parent=0 // pred_check
    _
  $region23: #{tpu_custom_call.1} parent=0 // pred_check_branch
    %199 = sbr.rel (0) target = $region25
  $region24: #{tpu_custom_call.1} parent=0 // pred_region
    _
  $region25: #{tpu_custom_call.1} parent=0 // pred_fallthru
    _

</llo_original>
